<compile_context>
chip_gen: v6e
topology: v6e:2x2x1
jax: 0.10.0
libtpu: 0.0.40
codegen_flags: <defaults>
</compile_context>

<pallas_src>
import math

import jax
import jax.numpy as jnp
from jax import lax
from jax.experimental import pallas as pl
from jax.experimental.pallas import tpu as pltpu

HIDDEN = 768          # input features of nn.Linear(768, 3)
NUM_CLASSES = 3       # output width (written directly, unpadded)
INV_SQRT2 = 1.0 / math.sqrt(2.0)


def _round_up(x, m):
    return ((x + m - 1) // m) * m


def _classifier_kernel(x_ref, w_ref, b_ref, o_ref):
    # x_ref: (TB, 768)   w_ref: (768, 3)   b_ref: (1, 3)   o_ref: (TB, 3)
    x = x_ref[...].astype(jnp.float32)
    # Exact GELU (erf form), identical to the PyTorch module.
    gelu = x * 0.5 * (1.0 + lax.erf(x * INV_SQRT2))
    out = jnp.dot(gelu, w_ref[...].astype(jnp.float32),
                  preferred_element_type=jnp.float32)
    out = out + b_ref[...].astype(jnp.float32)  # (1, 3) broadcasts over rows
    o_ref[...] = out.astype(o_ref.dtype)


def classifier_forward(feature, weight, bias, *, block_rows=1024):
    """feature: (B, 768); weight: (768, 3); bias: (3,) -> (B, 3)."""
    B, H = feature.shape
    assert H == HIDDEN, f"expected hidden={HIDDEN}, got {H}"
    assert weight.shape == (HIDDEN, NUM_CLASSES)
    assert bias.shape == (NUM_CLASSES,)

    b2 = bias.reshape(1, NUM_CLASSES)

    # Batch tile: multiple of 8 sublanes, capped at block_rows. For a batch that is
    # big enough to be worth splitting, guarantee >= 2 grid steps so the "parallel"
    # axis can shard across v7x's 2 TensorCores instead of leaving one idle.
    tb = min(block_rows, _round_up(B, 8))
    if B >= 256:
        tb = min(tb, _round_up(-(-B // 2), 8))
    grid = (pl.cdiv(B, tb),)

    cost = pl.CostEstimate(
        flops=2 * B * HIDDEN * NUM_CLASSES,
        transcendentals=B * HIDDEN,                       # erf per element (advisory)
        bytes_accessed=(B * HIDDEN + HIDDEN * NUM_CLASSES
                        + NUM_CLASSES + B * NUM_CLASSES) * 4,
    )

    return pl.pallas_call(
        _classifier_kernel,
        out_shape=jax.ShapeDtypeStruct((B, NUM_CLASSES), feature.dtype),
        grid_spec=pltpu.PrefetchScalarGridSpec(
            num_scalar_prefetch=0,
            grid=grid,
            in_specs=[
                pl.BlockSpec((tb, HIDDEN), lambda i: (i, 0)),          # x tiles, pipelined
                pl.BlockSpec((HIDDEN, NUM_CLASSES), lambda i: (0, 0)),  # W: VMEM-resident
                pl.BlockSpec((1, NUM_CLASSES), lambda i: (0, 0)),       # b: VMEM-resident
            ],
            out_specs=pl.BlockSpec((tb, NUM_CLASSES), lambda i: (i, 0)),
        ),
        compiler_params=pltpu.CompilerParams(
            dimension_semantics=("parallel",)),   # shardable across v7x's 2 TCs
        cost_estimate=cost,
    )(feature, weight, b2)


def _reference(feature, weight, bias):
    gelu = feature * 0.5 * (1.0 + lax.erf(feature * INV_SQRT2))
    return gelu @ weight + bias


if __name__ == "__main__":
    key = jax.random.PRNGKey(0)
    k_x, k_w, k_b = jax.random.split(key, 3)

    # Deterministic synthetic parameters (nn.Linear(768, 3) shapes).
    bound = 1.0 / math.sqrt(HIDDEN)
    weight = jax.random.uniform(k_w, (HIDDEN, NUM_CLASSES), jnp.float32,
                                minval=-bound, maxval=bound)
    bias = jax.random.uniform(k_b, (NUM_CLASSES,), jnp.float32,
                              minval=-bound, maxval=bound)

    # Small batch.
    batch = 8
    feature = jax.random.normal(k_x, (batch, HIDDEN), jnp.float32)
    out = jax.block_until_ready(classifier_forward(feature, weight, bias))
    ref = _reference(feature, weight, bias)
    assert out.shape == (batch, NUM_CLASSES)
    assert jnp.allclose(out, ref, atol=1e-4, rtol=1e-4)

    # Ragged batch (not a multiple of 8).
    feature2 = jax.random.normal(k_x, (37, HIDDEN), jnp.float32)
    out2 = jax.block_until_ready(classifier_forward(feature2, weight, bias))
    ref2 = _reference(feature2, weight, bias)
    assert out2.shape == (37, NUM_CLASSES)
    assert jnp.allclose(out2, ref2, atol=1e-4, rtol=1e-4)

    # Batch large enough to trigger the >=2-grid-step (megacore) path.
    feature3 = jax.random.normal(k_x, (300, HIDDEN), jnp.float32)
    out3 = jax.block_until_ready(classifier_forward(feature3, weight, bias))
    ref3 = _reference(feature3, weight, bias)
    assert out3.shape == (300, NUM_CLASSES)
    assert jnp.allclose(out3, ref3, atol=1e-4, rtol=1e-4)

    print("KERNEL_OK")
</pallas_src>

<mosaic_0001>
module attributes {stable_mosaic.version = 11 : i64} {
  func.func @_classifier_kernel(%arg0: i32, %arg1: memref<8x768xf32, #tpu.memory_space<vmem>>, %arg2: memref<768x3xf32, #tpu.memory_space<vmem>>, %arg3: memref<1x3xf32, #tpu.memory_space<vmem>>, %arg4: memref<8x3xf32, #tpu.memory_space<vmem>>) attributes {dimension_semantics = [#tpu.dimension_semantics<parallel>], iteration_bounds = array<i64: 1>, scalar_prefetch = 0 : i64, scratch_operands = 0 : i64, tpu.core_type = #tpu.core_type<tc>, window_params = [{transform_indices = @transform_0, window_bounds = array<i64: 8, 768>}, {pipeline_mode = #tpu.pipeline_mode<synchronous>, transform_indices = @transform_1, window_bounds = array<i64: 768, 3>}, {pipeline_mode = #tpu.pipeline_mode<synchronous>, transform_indices = @transform_2, window_bounds = array<i64: 1, 3>}, {transform_indices = @transform_3, window_bounds = array<i64: 8, 3>}]} {
    %c0 = arith.constant 0 : index
    %c0_0 = arith.constant 0 : index
    %0 = vector.load %arg1[%c0, %c0_0] : memref<8x768xf32, #tpu.memory_space<vmem>>, vector<8x768xf32>
    %cst = arith.constant 5.000000e-01 : f32
    %1 = vector.broadcast %cst : f32 to vector<8x768xf32>
    %2 = arith.mulf %0, %1 : vector<8x768xf32>
    %cst_1 = arith.constant 0.707106769 : f32
    %3 = vector.broadcast %cst_1 : f32 to vector<8x768xf32>
    %4 = arith.mulf %0, %3 : vector<8x768xf32>
    %5 = math.erf %4 : vector<8x768xf32>
    %cst_2 = arith.constant 1.000000e+00 : f32
    %6 = vector.broadcast %cst_2 : f32 to vector<8x768xf32>
    %7 = arith.addf %6, %5 : vector<8x768xf32>
    %8 = arith.mulf %2, %7 : vector<8x768xf32>
    %c0_3 = arith.constant 0 : index
    %c0_4 = arith.constant 0 : index
    %9 = vector.load %arg2[%c0_3, %c0_4] : memref<768x3xf32, #tpu.memory_space<vmem>>, vector<768x3xf32>
    %cst_5 = arith.constant dense<0.000000e+00> : vector<8x3xf32>
    %10 = tpu.matmul %8, %9, %cst_5 {dimension_numbers = #tpu.dot_dimension_numbers<[1], [0], [0], [1], [0, 0, 1, 1], [], []>} : vector<8x768xf32>, vector<768x3xf32>, vector<8x3xf32> -> vector<8x3xf32>
    %c0_6 = arith.constant 0 : index
    %c0_7 = arith.constant 0 : index
    %11 = vector.load %arg3[%c0_6, %c0_7] : memref<1x3xf32, #tpu.memory_space<vmem>>, vector<1x3xf32>
    %12 = vector.broadcast %11 : vector<1x3xf32> to vector<8x3xf32>
    %13 = arith.addf %10, %12 : vector<8x3xf32>
    %c0_8 = arith.constant 0 : index
    %c0_9 = arith.constant 0 : index
    %14 = vector.load %arg4[%c0_8, %c0_9] : memref<8x3xf32, #tpu.memory_space<vmem>>, vector<8x3xf32>
    tpu.vector_store %arg4[%c0_8, %c0_9], %13 {strides = array<i32>} : memref<8x3xf32, #tpu.memory_space<vmem>>, vector<8x3xf32>,
    return
  }
  func.func @transform_0(%arg0: i32) -> (i32, i32) {
    %c0_i32 = arith.constant 0 : i32
    %c0_i32_0 = arith.constant 0 : i32
    return %arg0, %c0_i32 : i32, i32
  }
  func.func @transform_1(%arg0: i32) -> (i32, i32) {
    %c0_i32 = arith.constant 0 : i32
    %c0_i32_0 = arith.constant 0 : i32
    %c0_i32_1 = arith.constant 0 : i32
    return %c0_i32, %c0_i32_0 : i32, i32
  }
  func.func @transform_2(%arg0: i32) -> (i32, i32) {
    %c0_i32 = arith.constant 0 : i32
    %c0_i32_0 = arith.constant 0 : i32
    %c0_i32_1 = arith.constant 0 : i32
    return %c0_i32, %c0_i32_0 : i32, i32
  }
  func.func @transform_3(%arg0: i32) -> (i32, i32) {
    %c0_i32 = arith.constant 0 : i32
    %c0_i32_0 = arith.constant 0 : i32
    return %arg0, %c0_i32 : i32, i32
  }
}

</mosaic_0001>

<llo_original>
// kernel: tpu_custom_call.1
$region0: #{tpu_custom_call.1}
  #allocation0 [shape = 'u32[]', space=smem, size = 0x4, offset = 0x4, fixed_abs, tag = 'smem constant byte address 0x4 - core index']
  #allocation1 [shape = 'u32[144,128]{1,0:T(1,128)}', space=vmem, size = 0x12000, scoped, tag = 'internal scratch']
  %s0 = inlined_call_operand.vmem [shape: f32[8,768], index: 0, kind: input, shape index: {}]
  %s1 = inlined_call_operand.vmem [shape: f32[768,3], index: 1, kind: input, shape index: {}]
  %s2 = inlined_call_operand.vmem [shape: f32[1,3], index: 2, kind: input, shape index: {}]
  %s3 = inlined_call_operand.vmem [shape: f32[8,3], index: 3, kind: output, shape index: {}]
  %s4 = sld [smem:[#allocation0]]
  $region22: #{tpu_custom_call.1} parent=0
    _
  %s6 = ssub.s32 1, %s4
  %s7 = scalar_select 0, %s6, %s4
  // Predicated region
  $region2: #{tpu_custom_call.1} parent=0 // pred_check
    _
  $region3: #{tpu_custom_call.1} parent=0 // pred_check_branch
    %9 = sbr.rel (0) target = $region5
  $region4: #{tpu_custom_call.1} parent=0 // pred_region
    _
  $region5: #{tpu_custom_call.1} parent=0 // pred_fallthru
    _
  // Predicated region
  $region6: #{tpu_custom_call.1} parent=0 // pred_check
    _
  $region7: #{tpu_custom_call.1} parent=0 // pred_check_branch
    %11 = sbr.rel (0) target = $region9
  $region8: #{tpu_custom_call.1} parent=0 // pred_region
    _
  $region9: #{tpu_custom_call.1} parent=0 // pred_fallthru
    _
  // Predicated region
  $region10: #{tpu_custom_call.1} parent=0 // pred_check
    _
  $region11: #{tpu_custom_call.1} parent=0 // pred_check_branch
    %13 = sbr.rel (0) target = $region13
  $region12: #{tpu_custom_call.1} parent=0 // pred_region
    _
  $region13: #{tpu_custom_call.1} parent=0 // pred_fallthru
    _
  %v14 = vld [vmem:[%s0] sm:$0xff]
  %v15 = vld [vmem:[%s0 + $0x8] sm:$0xff]
  %v16 = vld [vmem:[%s0 + $0x10] sm:$0xff]
  %v17 = vld [vmem:[%s0 + $0x18] sm:$0xff]
  %v18 = vld [vmem:[%s0 + $0x20] sm:$0xff]
  %v19 = vld [vmem:[%s0 + $0x28] sm:$0xff]
  %v20 = vmul.f32 %v14, 0.5
  %v21 = vmul.f32 %v15, 0.5
  %v22 = vmul.f32 %v16, 0.5
  %v23 = vmul.f32 %v17, 0.5
  %v24 = vmul.f32 %v18, 0.5
  %v25 = vmul.f32 %v19, 0.5
  %v26 = vmul.f32 %v14, 0.70710677
  %v27 = vmul.f32 %v15, 0.70710677
  %v28 = vmul.f32 %v16, 0.70710677
  %v29 = vmul.f32 %v17, 0.70710677
  %v30 = vmul.f32 %v18, 0.70710677
  %v31 = vmul.f32 %v19, 0.70710677
  %v32 = verf.f32.pop %v26
  %v33 = verf.f32.pop %v27
  %v34 = verf.f32.pop %v28
  %v35 = verf.f32.pop %v29
  %v36 = verf.f32.pop %v30
  %v37 = verf.f32.pop %v31
  %v38 = vadd.f32 %v32, 1.0
  %v39 = vadd.f32 %v33, 1.0
  %v40 = vadd.f32 %v34, 1.0
  %v41 = vadd.f32 %v35, 1.0
  %v42 = vadd.f32 %v36, 1.0
  %v43 = vadd.f32 %v37, 1.0
  %v44 = vmul.f32 %v20, %v38
  %v45 = vmul.f32 %v21, %v39
  %v46 = vmul.f32 %v22, %v40
  %v47 = vmul.f32 %v23, %v41
  %v48 = vmul.f32 %v24, %v42
  %v49 = vmul.f32 %v25, %v43
  %v50 = vld [vmem:[%s1] sm:$0xff]
  %v51 = vld [vmem:[%s1 + $0x8] sm:$0xff]
  %v52 = vld [vmem:[%s1 + $0x10] sm:$0xff]
  %v53 = vld [vmem:[%s1 + $0x18] sm:$0xff]
  %v54 = vld [vmem:[%s1 + $0x20] sm:$0xff]
  %v55 = vld [vmem:[%s1 + $0x28] sm:$0xff]
  %v56 = vld [vmem:[%s1 + $0x30] sm:$0xff]
  %v57 = vld [vmem:[%s1 + $0x38] sm:$0xff]
  %v58 = vld [vmem:[%s1 + $0x40] sm:$0xff]
  %v59 = vld [vmem:[%s1 + $0x48] sm:$0xff]
  %v60 = vld [vmem:[%s1 + $0x50] sm:$0xff]
  %v61 = vld [vmem:[%s1 + $0x58] sm:$0xff]
  %v62 = vld [vmem:[%s1 + $0x60] sm:$0xff]
  %v63 = vld [vmem:[%s1 + $0x68] sm:$0xff]
  %v64 = vld [vmem:[%s1 + $0x70] sm:$0xff]
  %v65 = vld [vmem:[%s1 + $0x78] sm:$0xff]
  %v66 = vld [vmem:[%s1 + $0x80] sm:$0xff]
  %v67 = vld [vmem:[%s1 + $0x88] sm:$0xff]
  %v68 = vld [vmem:[%s1 + $0x90] sm:$0xff]
  %v69 = vld [vmem:[%s1 + $0x98] sm:$0xff]
  %v70 = vld [vmem:[%s1 + $0xa0] sm:$0xff]
  %v71 = vld [vmem:[%s1 + $0xa8] sm:$0xff]
  %v72 = vld [vmem:[%s1 + $0xb0] sm:$0xff]
  %v73 = vld [vmem:[%s1 + $0xb8] sm:$0xff]
  %v74 = vld [vmem:[%s1 + $0xc0] sm:$0xff]
  %v75 = vld [vmem:[%s1 + $0xc8] sm:$0xff]
  %v76 = vld [vmem:[%s1 + $0xd0] sm:$0xff]
  %v77 = vld [vmem:[%s1 + $0xd8] sm:$0xff]
  %v78 = vld [vmem:[%s1 + $0xe0] sm:$0xff]
  %v79 = vld [vmem:[%s1 + $0xe8] sm:$0xff]
  %v80 = vld [vmem:[%s1 + $0xf0] sm:$0xff]
  %v81 = vld [vmem:[%s1 + $0xf8] sm:$0xff]
  %v82 = vld [vmem:[%s1 + $0x100] sm:$0xff]
  %v83 = vld [vmem:[%s1 + $0x108] sm:$0xff]
  %v84 = vld [vmem:[%s1 + $0x110] sm:$0xff]
  %v85 = vld [vmem:[%s1 + $0x118] sm:$0xff]
  %v86 = vld [vmem:[%s1 + $0x120] sm:$0xff]
  %v87 = vld [vmem:[%s1 + $0x128] sm:$0xff]
  %v88 = vld [vmem:[%s1 + $0x130] sm:$0xff]
  %v89 = vld [vmem:[%s1 + $0x138] sm:$0xff]
  %v90 = vld [vmem:[%s1 + $0x140] sm:$0xff]
  %v91 = vld [vmem:[%s1 + $0x148] sm:$0xff]
  %v92 = vld [vmem:[%s1 + $0x150] sm:$0xff]
  %v93 = vld [vmem:[%s1 + $0x158] sm:$0xff]
  %v94 = vld [vmem:[%s1 + $0x160] sm:$0xff]
  %v95 = vld [vmem:[%s1 + $0x168] sm:$0xff]
  %v96 = vld [vmem:[%s1 + $0x170] sm:$0xff]
  %v97 = vld [vmem:[%s1 + $0x178] sm:$0xff]
  %v98 = vld [vmem:[%s1 + $0x180] sm:$0xff]
  %v99 = vld [vmem:[%s1 + $0x188] sm:$0xff]
  %v100 = vld [vmem:[%s1 + $0x190] sm:$0xff]
  %v101 = vld [vmem:[%s1 + $0x198] sm:$0xff]
  %v102 = vld [vmem:[%s1 + $0x1a0] sm:$0xff]
  %v103 = vld [vmem:[%s1 + $0x1a8] sm:$0xff]
  %v104 = vld [vmem:[%s1 + $0x1b0] sm:$0xff]
  %v105 = vld [vmem:[%s1 + $0x1b8] sm:$0xff]
  %v106 = vld [vmem:[%s1 + $0x1c0] sm:$0xff]
  %v107 = vld [vmem:[%s1 + $0x1c8] sm:$0xff]
  %v108 = vld [vmem:[%s1 + $0x1d0] sm:$0xff]
  %v109 = vld [vmem:[%s1 + $0x1d8] sm:$0xff]
  %v110 = vld [vmem:[%s1 + $0x1e0] sm:$0xff]
  %v111 = vld [vmem:[%s1 + $0x1e8] sm:$0xff]
  %v112 = vld [vmem:[%s1 + $0x1f0] sm:$0xff]
  %v113 = vld [vmem:[%s1 + $0x1f8] sm:$0xff]
  %v114 = vld [vmem:[%s1 + $0x200] sm:$0xff]
  %v115 = vld [vmem:[%s1 + $0x208] sm:$0xff]
  %v116 = vld [vmem:[%s1 + $0x210] sm:$0xff]
  %v117 = vld [vmem:[%s1 + $0x218] sm:$0xff]
  %v118 = vld [vmem:[%s1 + $0x220] sm:$0xff]
  %v119 = vld [vmem:[%s1 + $0x228] sm:$0xff]
  %v120 = vld [vmem:[%s1 + $0x230] sm:$0xff]
  %v121 = vld [vmem:[%s1 + $0x238] sm:$0xff]
  %v122 = vld [vmem:[%s1 + $0x240] sm:$0xff]
  %v123 = vld [vmem:[%s1 + $0x248] sm:$0xff]
  %v124 = vld [vmem:[%s1 + $0x250] sm:$0xff]
  %v125 = vld [vmem:[%s1 + $0x258] sm:$0xff]
  %v126 = vld [vmem:[%s1 + $0x260] sm:$0xff]
  %v127 = vld [vmem:[%s1 + $0x268] sm:$0xff]
  %v128 = vld [vmem:[%s1 + $0x270] sm:$0xff]
  %v129 = vld [vmem:[%s1 + $0x278] sm:$0xff]
  %v130 = vld [vmem:[%s1 + $0x280] sm:$0xff]
  %v131 = vld [vmem:[%s1 + $0x288] sm:$0xff]
  %v132 = vld [vmem:[%s1 + $0x290] sm:$0xff]
  %v133 = vld [vmem:[%s1 + $0x298] sm:$0xff]
  %v134 = vld [vmem:[%s1 + $0x2a0] sm:$0xff]
  %v135 = vld [vmem:[%s1 + $0x2a8] sm:$0xff]
  %v136 = vld [vmem:[%s1 + $0x2b0] sm:$0xff]
  %v137 = vld [vmem:[%s1 + $0x2b8] sm:$0xff]
  %v138 = vld [vmem:[%s1 + $0x2c0] sm:$0xff]
  %v139 = vld [vmem:[%s1 + $0x2c8] sm:$0xff]
  %v140 = vld [vmem:[%s1 + $0x2d0] sm:$0xff]
  %v141 = vld [vmem:[%s1 + $0x2d8] sm:$0xff]
  %v142 = vld [vmem:[%s1 + $0x2e0] sm:$0xff]
  %v143 = vld [vmem:[%s1 + $0x2e8] sm:$0xff]
  %v144 = vld [vmem:[%s1 + $0x2f0] sm:$0xff]
  %v145 = vld [vmem:[%s1 + $0x2f8] sm:$0xff]
  %v146 = vld [vmem:[%s2] sm:$0x1]
  %v148 = vlaneseq
  %v149 = vshrl.u32 %v148, 7
  %v150 = vsub.s32 0, %v149
  %v151 = vrot.slane %v146, %v150
  %153 = vmatprep.subr.mxu0 0.0
  %154 = vmatpush1.msra.mxu0 %v65
  %155 = vmatprep.subr.mxu0 0.0
  %156 = vmatpush1.msra.mxu0 %v64
  %157 = vmatprep.subr.mxu0 0.0
  %158 = vmatpush1.msra.mxu0 %v63
  %159 = vmatprep.subr.mxu0 0.0
  %160 = vmatpush1.msra.mxu0 %v62
  %161 = vmatprep.subr.mxu0 0.0
  %162 = vmatpush1.msra.mxu0 %v61
  %163 = vmatprep.subr.mxu0 0.0
  %164 = vmatpush1.msra.mxu0 %v60
  %165 = vmatprep.subr.mxu0 0.0
  %166 = vmatpush1.msra.mxu0 %v59
  %167 = vmatprep.subr.mxu0 0.0
  %168 = vmatpush1.msra.mxu0 %v58
  %169 = vmatprep.subr.mxu0 0.0
  %170 = vmatpush1.msra.mxu0 %v57
  %171 = vmatprep.subr.mxu0 0.0
  %172 = vmatpush1.msra.mxu0 %v56
  %173 = vmatprep.subr.mxu0 0.0
  %174 = vmatpush1.msra.mxu0 %v55
  %175 = vmatprep.subr.mxu0 0.0
  %176 = vmatpush1.msra.mxu0 %v54
  %177 = vmatprep.subr.mxu0 0.0
  %178 = vmatpush1.msra.mxu0 %v53
  %179 = vmatprep.subr.mxu0 0.0
  %180 = vmatpush1.msra.mxu0 %v52
  %181 = vmatprep.subr.mxu0 0.0
  %182 = vmatpush1.msra.mxu0 %v51
  %183 = vmatprep.subr.mxu0 0.0
  %184 = vmatpush1.msra.mxu0 %v50
  %185 = vmatprep.subr.mxu0 0.0
  %186 = vmatpush2.msra.mxu0 %v81
  %187 = vmatprep.subr.mxu0 0.0
  %188 = vmatpush2.msra.mxu0 %v80
  %189 = vmatprep.subr.mxu0 0.0
  %190 = vmatpush2.msra.mxu0 %v79
  %191 = vmatprep.subr.mxu0 0.0
  %192 = vmatpush2.msra.mxu0 %v78
  %193 = vmatprep.subr.mxu0 0.0
  %194 = vmatpush2.msra.mxu0 %v77
  %195 = vmatprep.subr.mxu0 0.0
  %196 = vmatpush2.msra.mxu0 %v76
  %197 = vmatprep.subr.mxu0 0.0
  %198 = vmatpush2.msra.mxu0 %v75
  %199 = vmatprep.subr.mxu0 0.0
  %200 = vmatpush2.msra.mxu0 %v74
  %201 = vmatprep.subr.mxu0 0.0
  %202 = vmatpush2.msra.mxu0 %v73
  %203 = vmatprep.subr.mxu0 0.0
  %204 = vmatpush2.msra.mxu0 %v72
  %205 = vmatprep.subr.mxu0 0.0
  %206 = vmatpush2.msra.mxu0 %v71
  %207 = vmatprep.subr.mxu0 0.0
  %208 = vmatpush2.msra.mxu0 %v70
  %209 = vmatprep.subr.mxu0 0.0
  %210 = vmatpush2.msra.mxu0 %v69
  %211 = vmatprep.subr.mxu0 0.0
  %212 = vmatpush2.msra.mxu0 %v68
  %213 = vmatprep.subr.mxu0 0.0
  %214 = vmatpush2.msra.mxu0 %v67
  %215 = vmatprep.subr.mxu0 0.0
  %216 = vmatpush2.msra.mxu0 %v66
  %217 = vmatprep.mubr.f32.mxu0 %v45
  %218 = vmatmul.mubr.f32.gmra.mxu0 %v44
  %v219 = vpop.f32.mrf.mxu0
  %v220 = vadd.f32 %v151, %v219
  %v221 = vpop.f32.mrf.mxu0
  %222 = vdwg.mxu0
  %223 = vmatprep.subr.mxu0 0.0
  %224 = vmatpush1.msra.mxu0 %v97
  %225 = vmatprep.subr.mxu0 0.0
  %226 = vmatpush1.msra.mxu0 %v96
  %227 = vmatprep.subr.mxu0 0.0
  %228 = vmatpush1.msra.mxu0 %v95
  %229 = vmatprep.subr.mxu0 0.0
  %230 = vmatpush1.msra.mxu0 %v94
  %231 = vmatprep.subr.mxu0 0.0
  %232 = vmatpush1.msra.mxu0 %v93
  %233 = vmatprep.subr.mxu0 0.0
  %234 = vmatpush1.msra.mxu0 %v92
  %235 = vmatprep.subr.mxu0 0.0
  %236 = vmatpush1.msra.mxu0 %v91
  %237 = vmatprep.subr.mxu0 0.0
  %238 = vmatpush1.msra.mxu0 %v90
  %239 = vmatprep.subr.mxu0 0.0
  %240 = vmatpush1.msra.mxu0 %v89
  %241 = vmatprep.subr.mxu0 0.0
  %242 = vmatpush1.msra.mxu0 %v88
  %243 = vmatprep.subr.mxu0 0.0
  %244 = vmatpush1.msra.mxu0 %v87
  %245 = vmatprep.subr.mxu0 0.0
  %246 = vmatpush1.msra.mxu0 %v86
  %247 = vmatprep.subr.mxu0 0.0
  %248 = vmatpush1.msra.mxu0 %v85
  %249 = vmatprep.subr.mxu0 0.0
  %250 = vmatpush1.msra.mxu0 %v84
  %251 = vmatprep.subr.mxu0 0.0
  %252 = vmatpush1.msra.mxu0 %v83
  %253 = vmatprep.subr.mxu0 0.0
  %254 = vmatpush1.msra.mxu0 %v82
  %255 = vmatprep.subr.mxu0 0.0
  %256 = vmatpush2.msra.mxu0 %v113
  %257 = vmatprep.subr.mxu0 0.0
  %258 = vmatpush2.msra.mxu0 %v112
  %259 = vmatprep.subr.mxu0 0.0
  %260 = vmatpush2.msra.mxu0 %v111
  %261 = vmatprep.subr.mxu0 0.0
  %262 = vmatpush2.msra.mxu0 %v110
  %263 = vmatprep.subr.mxu0 0.0
  %264 = vmatpush2.msra.mxu0 %v109
  %265 = vmatprep.subr.mxu0 0.0
  %266 = vmatpush2.msra.mxu0 %v108
  %267 = vmatprep.subr.mxu0 0.0
  %268 = vmatpush2.msra.mxu0 %v107
  %269 = vmatprep.subr.mxu0 0.0
  %270 = vmatpush2.msra.mxu0 %v106
  %271 = vmatprep.subr.mxu0 0.0
  %272 = vmatpush2.msra.mxu0 %v105
  %273 = vmatprep.subr.mxu0 0.0
  %274 = vmatpush2.msra.mxu0 %v104
  %275 = vmatprep.subr.mxu0 0.0
  %276 = vmatpush2.msra.mxu0 %v103
  %277 = vmatprep.subr.mxu0 0.0
  %278 = vmatpush2.msra.mxu0 %v102
  %279 = vmatprep.subr.mxu0 0.0
  %280 = vmatpush2.msra.mxu0 %v101
  %281 = vmatprep.subr.mxu0 0.0
  %282 = vmatpush2.msra.mxu0 %v100
  %283 = vmatprep.subr.mxu0 0.0
  %284 = vmatpush2.msra.mxu0 %v99
  %285 = vmatprep.subr.mxu0 0.0
  %286 = vmatpush2.msra.mxu0 %v98
  %287 = vmatprep.mubr.f32.mxu0 %v47
  %288 = vmatmul.mubr.f32.gmra.mxu0 %v46
  %v289 = vpop.f32.mrf.mxu0
  %v290 = vadd.f32 %v220, %v289
  %v291 = vpop.f32.mrf.mxu0
  %292 = vdwg.mxu0
  %293 = vmatprep.subr.mxu0 0.0
  %294 = vmatpush1.msra.mxu0 %v129
  %295 = vmatprep.subr.mxu0 0.0
  %296 = vmatpush1.msra.mxu0 %v128
  %297 = vmatprep.subr.mxu0 0.0
  %298 = vmatpush1.msra.mxu0 %v127
  %299 = vmatprep.subr.mxu0 0.0
  %300 = vmatpush1.msra.mxu0 %v126
  %301 = vmatprep.subr.mxu0 0.0
  %302 = vmatpush1.msra.mxu0 %v125
  %303 = vmatprep.subr.mxu0 0.0
  %304 = vmatpush1.msra.mxu0 %v124
  %305 = vmatprep.subr.mxu0 0.0
  %306 = vmatpush1.msra.mxu0 %v123
  %307 = vmatprep.subr.mxu0 0.0
  %308 = vmatpush1.msra.mxu0 %v122
  %309 = vmatprep.subr.mxu0 0.0
  %310 = vmatpush1.msra.mxu0 %v121
  %311 = vmatprep.subr.mxu0 0.0
  %312 = vmatpush1.msra.mxu0 %v120
  %313 = vmatprep.subr.mxu0 0.0
  %314 = vmatpush1.msra.mxu0 %v119
  %315 = vmatprep.subr.mxu0 0.0
  %316 = vmatpush1.msra.mxu0 %v118
  %317 = vmatprep.subr.mxu0 0.0
  %318 = vmatpush1.msra.mxu0 %v117
  %319 = vmatprep.subr.mxu0 0.0
  %320 = vmatpush1.msra.mxu0 %v116
  %321 = vmatprep.subr.mxu0 0.0
  %322 = vmatpush1.msra.mxu0 %v115
  %323 = vmatprep.subr.mxu0 0.0
  %324 = vmatpush1.msra.mxu0 %v114
  %325 = vmatprep.subr.mxu0 0.0
  %326 = vmatpush2.msra.mxu0 %v145
  %327 = vmatprep.subr.mxu0 0.0
  %328 = vmatpush2.msra.mxu0 %v144
  %329 = vmatprep.subr.mxu0 0.0
  %330 = vmatpush2.msra.mxu0 %v143
  %331 = vmatprep.subr.mxu0 0.0
  %332 = vmatpush2.msra.mxu0 %v142
  %333 = vmatprep.subr.mxu0 0.0
  %334 = vmatpush2.msra.mxu0 %v141
  %335 = vmatprep.subr.mxu0 0.0
  %336 = vmatpush2.msra.mxu0 %v140
  %337 = vmatprep.subr.mxu0 0.0
  %338 = vmatpush2.msra.mxu0 %v139
  %339 = vmatprep.subr.mxu0 0.0
  %340 = vmatpush2.msra.mxu0 %v138
  %341 = vmatprep.subr.mxu0 0.0
  %342 = vmatpush2.msra.mxu0 %v137
  %343 = vmatprep.subr.mxu0 0.0
  %344 = vmatpush2.msra.mxu0 %v136
  %345 = vmatprep.subr.mxu0 0.0
  %346 = vmatpush2.msra.mxu0 %v135
  %347 = vmatprep.subr.mxu0 0.0
  %348 = vmatpush2.msra.mxu0 %v134
  %349 = vmatprep.subr.mxu0 0.0
  %350 = vmatpush2.msra.mxu0 %v133
  %351 = vmatprep.subr.mxu0 0.0
  %352 = vmatpush2.msra.mxu0 %v132
  %353 = vmatprep.subr.mxu0 0.0
  %354 = vmatpush2.msra.mxu0 %v131
  %355 = vmatprep.subr.mxu0 0.0
  %356 = vmatpush2.msra.mxu0 %v130
  %357 = vmatprep.mubr.f32.mxu0 %v49
  %358 = vmatmul.mubr.f32.gmra.mxu0 %v48
  %v359 = vpop.f32.mrf.mxu0
  %v360 = vadd.f32 %v290, %v359
  %v361 = vpop.f32.mrf.mxu0
  %362 = vdwg.mxu0
  %vm363 = vcmask 23552
  %364 = vst.msk [vmem:[%s3] sm:$0xff] %vm363, %v360
  // Predicated region
  $region14: #{tpu_custom_call.1} parent=0 // pred_check
    _
  $region15: #{tpu_custom_call.1} parent=0 // pred_check_branch
    %366 = sbr.rel (0) target = $region17
  $region16: #{tpu_custom_call.1} parent=0 // pred_region
    _
  $region17: #{tpu_custom_call.1} parent=0 // pred_fallthru
    _
  // Predicated region
  $region18: #{tpu_custom_call.1} parent=0 // pred_check
    _
  $region19: #{tpu_custom_call.1} parent=0 // pred_check_branch
    %368 = sbr.rel (0) target = $region21
  $region20: #{tpu_custom_call.1} parent=0 // pred_region
    _
  $region21: #{tpu_custom_call.1} parent=0 // pred_fallthru
    _

</llo_original>
